<compile_context>
chip_gen: v7x
topology: tpu7x:2x2x1
jax: 0.10.0
libtpu: 0.0.40
codegen_flags: <defaults>
</compile_context>

<pallas_src>
import functools

import jax
import jax.numpy as jnp
from jax.experimental import pallas as pl
from jax.experimental.pallas import tpu as pltpu

LANES = 128
FOLD_ROWS = 64             # accumulator rows; multiple of 32 (valid sublane
                           # packing for 4-, 2- and 1-byte dtypes)
MAX_BLOCK_ROWS = 4096      # f32: 2 MiB/tile, double-buffered -> ~4 MiB VMEM
FAST_PATH_ELEMS = 1 << 18  # below this, plain XLA beats pallas launch overhead


def _abs_pow(x, p):
    """Elementwise |x|**p (expects float x). Integer p uses square-and-multiply
    (pure VPU); fractional p uses a NaN-safe select around the generic pow."""
    if p == 1.0:
        return jnp.abs(x)
    if p == 2.0:
        return x * x
    if float(p).is_integer() and 1.0 <= p <= 16.0:
        k = int(p)
        if k % 2 == 0:
            base, k = x * x, k // 2      # even p: |x|**p == (x*x)**(p/2), no abs
        else:
            base = jnp.abs(x)
        result = None
        while True:
            if k & 1:
                result = base if result is None else result * base
            k >>= 1
            if not k:
                return result
            base = base * base
    a = jnp.abs(x)
    # 0**p lowers to exp(p*log(0)) -> NaN; keep this a *select*, not a mask-mul.
    return jnp.where(a > 0.0, a ** p, jnp.zeros_like(a))


def _num_tensorcores():
    """TensorCores per chip (1 on v5e/v6e, 2 on v7x). Conservative fallback: 1."""
    # TODO(synk): on v7x, verify the leading "parallel" grid axis really shards
    # across both TensorCores; if it does not, switch it to pltpu.CORE_PARALLEL.
    try:
        info = pltpu.get_tpu_info()
    except Exception:
        return 1
    for attr in ("num_cores", "num_tensorcores", "tensorcores_per_chip",
                 "num_cores_per_chip", "cores_per_chip", "tensor_cores_per_chip"):
        val = getattr(info, attr, None)
        if val is None:
            continue
        try:
            val = int(val)
        except (TypeError, ValueError):
            continue
        if val >= 1:
            return max(1, min(val, 2))
    return 1


def _norm_kernel(x_ref, o_ref, acc_ref, *, p, acc_rows, groups, reduce_axis,
                 unroll):
    j = pl.program_id(reduce_axis)

    @pl.when(j == 0)
    def _init():
        acc_ref[...] = jnp.zeros_like(acc_ref)

    if groups == 1:
        acc_ref[...] += _abs_pow(x_ref[...].astype(jnp.float32), p)
    else:
        # Fold the big tile into the small accumulator: stream sublane-aligned
        # sub-chunks and keep the (acc_rows, 128) carry in vregs.
        def fold(i, acc):
            start = pl.multiple_of(i * acc_rows, acc_rows)
            x = x_ref[pl.ds(start, acc_rows), :].astype(jnp.float32)
            return acc + _abs_pow(x, p)

        acc_ref[...] = jax.lax.fori_loop(0, groups, fold, acc_ref[...],
                                         unroll=unroll)

    @pl.when(j == pl.num_programs(reduce_axis) - 1)
    def _finalize():
        # Single cross-sublane reduce per core -> lane-dense (1, 1, 128) partial.
        o_ref[...] = jnp.sum(acc_ref[...], axis=0, keepdims=True)[None]


def norm_loss(beta, p=2.0, *, min_kernel_elems=FAST_PATH_ELEMS):
    """Pallas implementation of NormLoss(p).forward(beta) -> scalar p-norm."""
    p = float(p)
    dtype = beta.dtype
    is_float = jnp.issubdtype(dtype, jnp.floating)
    flat = jnp.ravel(beta)                 # free for contiguous inputs
    n = flat.shape[0]

    def finish(total):
        if p == 1.0:
            r = total
        elif p == 2.0:
            r = jnp.sqrt(total)
        else:
            r = total ** (1.0 / p)
        return r.astype(dtype) if is_float else r

    if n == 0:
        return finish(jnp.float32(0.0))

    # Small-input fast path: pallas launch + grid overhead dominates.
    if n < min_kernel_elems:
        return finish(jnp.sum(_abs_pow(flat.astype(jnp.float32), p)))

    itemsize = jnp.dtype(dtype).itemsize
    sublane = max(8, 32 // max(itemsize, 1))      # 8 (4B) / 16 (2B) / 32 (1B)
    num_cores = _num_tensorcores()

    rows = n // LANES                              # full 128-lane rows available
    num_blocks = max(1, pl.cdiv(rows, MAX_BLOCK_ROWS))
    num_blocks = pl.cdiv(num_blocks, num_cores) * num_cores
    rows_per_block = rows // num_blocks
    if rows_per_block >= FOLD_ROWS:
        block_rows = (rows_per_block // FOLD_ROWS) * FOLD_ROWS
        acc_rows = FOLD_ROWS
    else:
        block_rows = (rows_per_block // sublane) * sublane
        acc_rows = block_rows

    if block_rows == 0:
        # Too few aligned rows to tile across the grid; plain JAX handles it.
        return finish(jnp.sum(_abs_pow(flat.astype(jnp.float32), p)))

    blocks_per_core = num_blocks // num_cores
    groups = block_rows // acc_rows
    rows_kernel = num_blocks * block_rows
    n_kernel = rows_kernel * LANES

    # No host-side pad: kernel consumes the aligned prefix; the ragged
    # remainder (< one block + one lane-chunk) is summed in plain JAX below.
    lead = flat if n_kernel == n else flat[:n_kernel]
    x2d = lead.reshape(rows_kernel, LANES)         # native dtype; no f32 copy

    if num_cores > 1:
        grid = (num_cores, blocks_per_core)
        in_map = lambda c, j: (c * blocks_per_core + j, 0)
        out_map = lambda c, j: (c, 0, 0)
        dims = ("parallel", "arbitrary")
        reduce_axis = 1
    else:
        grid = (num_blocks,)
        in_map = lambda j: (j, 0)
        out_map = lambda j: (0, 0, 0)
        dims = ("arbitrary",)
        reduce_axis = 0

    kernel = functools.partial(
        _norm_kernel, p=p, acc_rows=acc_rows, groups=groups,
        reduce_axis=reduce_axis, unroll=(True if groups <= 8 else 4))

    partials = pl.pallas_call(
        kernel,
        out_shape=jax.ShapeDtypeStruct((num_cores, 1, LANES), jnp.float32),
        grid_spec=pltpu.PrefetchScalarGridSpec(
            num_scalar_prefetch=0,
            grid=grid,
            in_specs=[pl.BlockSpec((block_rows, LANES), in_map)],
            out_specs=pl.BlockSpec((1, 1, LANES), out_map),
            scratch_shapes=[pltpu.VMEM((acc_rows, LANES), jnp.float32)],
        ),
        compiler_params=pltpu.CompilerParams(dimension_semantics=dims),
    )(x2d)

    # Tiny epilogue in JAX: per-core (<= 2*128) partials + ragged tail + root.
    total = jnp.sum(partials)
    if n_kernel != n:
        tail = flat[n_kernel:]
        total = total + jnp.sum(_abs_pow(tail.astype(jnp.float32), p))
    return finish(total)


if __name__ == "__main__":
    root = jax.random.PRNGKey(0)
    k0, k1, k2 = jax.random.split(root, 3)

    # 1) Module-consistent small NCHW block, p=2 (forced through the kernel;
    #    the default fast path would route a tensor this small to plain XLA).
    beta = jax.random.normal(k0, (2, 4, 16, 16), dtype=jnp.float32)
    out = jax.block_until_ready(norm_loss(beta, p=2.0, min_kernel_elems=0))
    ref = jnp.sqrt(jnp.sum(beta.astype(jnp.float32) ** 2))
    assert jnp.allclose(out, ref, rtol=1e-4, atol=1e-5), (out, ref)

    # 2) Ragged size (n % 128 != 0) + integer p=3: exercises the plain-JAX tail
    #    path and the square-and-multiply pow.
    beta2 = jax.random.normal(k1, (5, 7, 13, 11), dtype=jnp.float32)
    out2 = jax.block_until_ready(norm_loss(beta2, p=3.0, min_kernel_elems=0))
    ref2 = jnp.sum(jnp.abs(beta2.astype(jnp.float32)) ** 3) ** (1.0 / 3.0)
    assert jnp.allclose(out2, ref2, rtol=1e-4, atol=1e-5), (out2, ref2)

    # 3) Larger input through the default path: multi-block grid, accumulator
    #    carried across grid steps, and the in-kernel fold loop (groups > 1).
    beta3 = jax.random.normal(k2, (512, 1056), dtype=jnp.float32)
    out3 = jax.block_until_ready(norm_loss(beta3, p=2.0))
    ref3 = jnp.sqrt(jnp.sum(beta3.astype(jnp.float32) ** 2))
    assert jnp.allclose(out3, ref3, rtol=1e-4, atol=1e-5), (out3, ref3)

    print("KERNEL_OK")
</pallas_src>

<mosaic_0001>
module attributes {stable_mosaic.version = 11 : i64} {
  func.func @_norm_kernel(%arg0: i32, %arg1: memref<16x128xf32, #tpu.memory_space<vmem>>, %arg2: memref<1x1x128xf32, #tpu.memory_space<vmem>>, %arg3: memref<16x128xf32, #tpu.memory_space<vmem>>) attributes {dimension_semantics = [#tpu.dimension_semantics<arbitrary>], iteration_bounds = array<i64: 1>, scalar_prefetch = 0 : i64, scratch_operands = 1 : i64, tpu.core_type = #tpu.core_type<tc>, window_params = [{transform_indices = @transform_0, window_bounds = array<i64: 16, 128>}, {pipeline_mode = #tpu.pipeline_mode<synchronous>, transform_indices = @transform_1, window_bounds = array<i64: 1, 1, 128>}]} {
    %c0_i32 = arith.constant 0 : i32
    %0 = arith.cmpi eq, %arg0, %c0_i32 : i32
    %1 = arith.extui %0 : i1 to i32
    %c0_i32_0 = arith.constant 0 : i32
    %2 = arith.cmpi ne, %1, %c0_i32_0 : i32
    scf.if %2 {
      %cst = arith.constant 0.000000e+00 : f32
      %11 = vector.broadcast %cst : f32 to vector<16x128xf32>
      %c0_8 = arith.constant 0 : index
      %c0_9 = arith.constant 0 : index
      %12 = vector.load %arg3[%c0_8, %c0_9] : memref<16x128xf32, #tpu.memory_space<vmem>>, vector<16x128xf32>
      tpu.vector_store %arg3[%c0_8, %c0_9], %11 {strides = array<i32>} : memref<16x128xf32, #tpu.memory_space<vmem>>, vector<16x128xf32>,
    } else {
    }
    %c0 = arith.constant 0 : index
    %c0_1 = arith.constant 0 : index
    %3 = vector.load %arg3[%c0, %c0_1] : memref<16x128xf32, #tpu.memory_space<vmem>>, vector<16x128xf32>
    %c0_2 = arith.constant 0 : index
    %c0_3 = arith.constant 0 : index
    %4 = vector.load %arg1[%c0_2, %c0_3] : memref<16x128xf32, #tpu.memory_space<vmem>>, vector<16x128xf32>
    %5 = arith.mulf %4, %4 : vector<16x128xf32>
    %6 = arith.addf %3, %5 : vector<16x128xf32>
    %c0_4 = arith.constant 0 : index
    %c0_5 = arith.constant 0 : index
    %7 = vector.load %arg3[%c0_4, %c0_5] : memref<16x128xf32, #tpu.memory_space<vmem>>, vector<16x128xf32>
    tpu.vector_store %arg3[%c0_4, %c0_5], %6 {strides = array<i32>} : memref<16x128xf32, #tpu.memory_space<vmem>>, vector<16x128xf32>,
    %c0_i32_6 = arith.constant 0 : i32
    %8 = arith.cmpi eq, %arg0, %c0_i32_6 : i32
    %9 = arith.extui %8 : i1 to i32
    %c0_i32_7 = arith.constant 0 : i32
    %10 = arith.cmpi ne, %9, %c0_i32_7 : i32
    scf.if %10 {
      %c0_8 = arith.constant 0 : index
      %c0_9 = arith.constant 0 : index
      %11 = vector.load %arg3[%c0_8, %c0_9] : memref<16x128xf32, #tpu.memory_space<vmem>>, vector<16x128xf32>
      %cst = arith.constant dense<0.000000e+00> : vector<128xf32>
      %12 = vector.multi_reduction <add>, %11, %cst [0] : vector<16x128xf32> to vector<128xf32>
      %13 = vector.shape_cast %12 : vector<128xf32> to vector<1x128xf32>
      %14 = vector.shape_cast %13 : vector<1x128xf32> to vector<1x1x128xf32>
      %c0_10 = arith.constant 0 : index
      %c0_11 = arith.constant 0 : index
      %c0_12 = arith.constant 0 : index
      %15 = vector.load %arg2[%c0_10, %c0_11, %c0_12] : memref<1x1x128xf32, #tpu.memory_space<vmem>>, vector<1x1x128xf32>
      tpu.vector_store %arg2[%c0_10, %c0_11, %c0_12], %14 {strides = array<i32>} : memref<1x1x128xf32, #tpu.memory_space<vmem>>, vector<1x1x128xf32>,
    } else {
    }
    return
  }
  func.func @transform_0(%arg0: i32) -> (i32, i32) {
    %c0_i32 = arith.constant 0 : i32
    %c0_i32_0 = arith.constant 0 : i32
    return %arg0, %c0_i32 : i32, i32
  }
  func.func @transform_1(%arg0: i32) -> (i32, i32, i32) {
    %c0_i32 = arith.constant 0 : i32
    %c0_i32_0 = arith.constant 0 : i32
    %c0_i32_1 = arith.constant 0 : i32
    %c0_i32_2 = arith.constant 0 : i32
    return %c0_i32, %c0_i32_0, %c0_i32_1 : i32, i32, i32
  }
}

</mosaic_0001>

<llo_original>
// kernel: tpu_custom_call.1
$region0: #{tpu_custom_call.1}
  #allocation0 [shape = 'u32[]', space=smem, size = 0x4, offset = 0x4, fixed_abs, tag = 'smem constant byte address 0x4 - core index']
  #allocation1 [shape = 'u32[144,128]{1,0:T(1,128)}', space=vmem, size = 0x12000, scoped, tag = 'internal scratch']
  #allocation2 [shape = 'f32[16,128]{1,0:T(8,128)}', space=vmem, size = 0x2000, scoped, tag = 'scratch operand']
  %s0 = inlined_call_operand.hbm [shape: f32[16,128], index: 0, kind: input, shape index: {}]
  %s1 = inlined_call_operand.hbm [shape: f32[1,1,128], index: 1, kind: output, shape index: {}]
  %s2 = sld [smem:[#allocation0]]
  $region26: #{tpu_custom_call.1} parent=0
    _
  %s4 = ssub.s32 1, %s2
  %s5 = scalar_select 0, %s4, %s2
  $region1: #{tpu_custom_call.1} parent=0
    #allocation3 [shape = 'u8[8192]{0}', space=vmem, size = 0x2000, scoped, tag = 'input window, operand 0, single buffered']
    #allocation4 [shape = 's32[1]{0}', space=sflag, size = 0x4, scoped, tag = 'scoped memory for tpu_custom_call.1']
    #allocation5 [shape = 's32[1]{0}', space=sflag, size = 0x4, scoped, tag = 'scoped memory for tpu_custom_call.1']
    #allocation6 [shape = 'u8[512]{0}', space=vmem, size = 0x400, scoped, tag = 'output window, operand 0, single buffered']
    %6 = vsyncpa [#allocation4], 0
    %7 = vsyncpa [#allocation5], 0
    // Predicated region
    $region2: #{tpu_custom_call.1} parent=1 // pred_check
      _
    $region3: #{tpu_custom_call.1} parent=1 // pred_check_branch
      %9 = sbr.rel (0) target = $region5
    $region4: #{tpu_custom_call.1} parent=1 // pred_region
      %s11 = ssub.s32 256, 256
      %12 = vsyncadd [#allocation4], %s11
      %s13 = sshll.u32 [#allocation3], 4
      %s14 = int_to_ptr.vmem [resolvable:$true] %s13
      %19 = dma.hbm_to_vmem [thread:$0]  %s0, 256, %s14, [#allocation4], 128, 128, 8
    $region5: #{tpu_custom_call.1} parent=1 // pred_fallthru
      _
    // Predicated region
    $region6: #{tpu_custom_call.1} parent=1 // pred_check
      _
    $region7: #{tpu_custom_call.1} parent=1 // pred_check_branch
      %21 = sbr.rel (0) target = $region9
    $region8: #{tpu_custom_call.1} parent=1 // pred_region
      %22 = dma.done [#allocation4], 256
    $region9: #{tpu_custom_call.1} parent=1 // pred_fallthru
      _
    %p23 = scmp.eq.s32.totalorder 0, 0
    // Predicated region
    $region10: #{tpu_custom_call.1} parent=1 // pred_check
      %p24 = pneg %p23
    $region11: #{tpu_custom_call.1} parent=1 // pred_check_branch
      %26 = sbr.rel (%p24) target = $region13
    $region12: #{tpu_custom_call.1} parent=1 // pred_region
      %27 = vst [vmem:[#allocation2] sm:$0xff] 0.0
      %28 = vst [vmem:[#allocation2 + $0x8] sm:$0xff] 0.0
    $region13: #{tpu_custom_call.1} parent=1 // pred_fallthru
      _
    %v29 = vld [vmem:[#allocation2] sm:$0xff]
    %v30 = vld [vmem:[#allocation2 + $0x8] sm:$0xff]
    %v31 = vld [vmem:[#allocation3] sm:$0xff]
    %v32 = vld [vmem:[#allocation3 + $0x8] sm:$0xff]
    %v33 = vmul.f32 %v31, %v31
    %v34 = vmul.f32 %v32, %v32
    %v35 = vadd.f32 %v29, %v33
    %v36 = vadd.f32 %v30, %v34
    %37 = vst [vmem:[#allocation2] sm:$0xff] %v35
    %38 = vst [vmem:[#allocation2 + $0x8] sm:$0xff] %v36
    // Predicated region
    $region14: #{tpu_custom_call.1} parent=1 // pred_check
      %p39 = pneg %p23
    $region15: #{tpu_custom_call.1} parent=1 // pred_check_branch
      %41 = sbr.rel (%p39) target = $region17
    $region16: #{tpu_custom_call.1} parent=1 // pred_region
      %v42 = vld [vmem:[#allocation2] sm:$0xff]
      %v43 = vld [vmem:[#allocation2 + $0x8] sm:$0xff]
      %v44 = vadd.f32 %v42, %v43
      %v45 = vrot.slane %v44, 4
      %v46 = vadd.f32 %v44, %v45
      %v47 = vrot.slane %v46, 2
      %v48 = vadd.f32 %v46, %v47
      %v49 = vrot.slane %v48, 1
      %v50 = vadd.f32 %v48, %v49
      %51 = vst [vmem:[#allocation6] sm:$0x1] %v50
    $region17: #{tpu_custom_call.1} parent=1 // pred_fallthru
      _
    // Predicated region
    $region18: #{tpu_custom_call.1} parent=1 // pred_check
      _
    $region19: #{tpu_custom_call.1} parent=1 // pred_check_branch
      %53 = sbr.rel (0) target = $region21
    $region20: #{tpu_custom_call.1} parent=1 // pred_region
      %s55 = ssub.s32 16, 16
      %56 = vsyncadd [#allocation5], %s55
      %s58 = sshll.u32 [#allocation6], 4
      %s59 = int_to_ptr.vmem [resolvable:$true] %s58
      %61 = dma.vmem_to_hbm [thread:$0]  %s59, 16, %s1, [#allocation5]
    $region21: #{tpu_custom_call.1} parent=1 // pred_fallthru
      _
    // Predicated region
    $region22: #{tpu_custom_call.1} parent=1 // pred_check
      _
    $region23: #{tpu_custom_call.1} parent=1 // pred_check_branch
      %63 = sbr.rel (0) target = $region25
    $region24: #{tpu_custom_call.1} parent=1 // pred_region
      %64 = dma.done [#allocation5], 16
    $region25: #{tpu_custom_call.1} parent=1 // pred_fallthru
      _
    %65 = vsyncpa [#allocation4], 1
    %66 = vsyncpa [#allocation5], 1

</llo_original>
